<compile_context>
chip_gen: v7x
topology: tpu7x:2x2x1
jax: 0.10.0
libtpu: 0.0.40
codegen_flags: <defaults>
</compile_context>

<pallas_src>
import functools

import jax
import jax.numpy as jnp
from jax.experimental import pallas as pl
from jax.experimental.pallas import tpu as pltpu


def _round_up(x, m):
    return ((x + m - 1) // m) * m


def _int_pow(x, n):
    """x**n via square-and-multiply: pure VPU multiplies, never touches EUP."""
    if n == 0:
        return jnp.ones_like(x)
    result = None
    base = x
    e = n
    while e > 0:
        if e & 1:
            result = base if result is None else result * base
        e >>= 1
        if e:
            base = base * base
    return result


def _focal_loss_kernel(pred_ref, true_ref, out_ref, acc_ref, *,
                       gamma, alpha, inner, blk_rows, valid_rows,
                       needs_mask, binary_targets):
    # grid = (chunks [parallel], inner [arbitrary, reduction])
    c = pl.program_id(0)
    j = pl.program_id(1)

    # zero the block-shaped accumulator at the start of each chunk's reduction
    @pl.when(j == 0)
    def _():
        acc_ref[...] = jnp.zeros_like(acc_ref)

    p = pred_ref[...].astype(jnp.float32)
    t = true_ref[...].astype(jnp.float32)

    is_pos = t != 0.0
    # per-element alpha weight: alpha for positives, (1-alpha) for negatives
    alpha_w = jnp.where(is_pos, jnp.float32(alpha), jnp.float32(1.0 - alpha))
    q = 1.0 - p  # computed once, reused by log(1-p) / the binary fast path

    if binary_targets:
        # hard {0,1} labels: one log instead of two (exact for t in {0,1})
        p_sel = jnp.where(is_pos, p, q)
        nlogpt = jnp.maximum(jnp.log(p_sel), -100.0)        # == -BCE  (<= 0)
        pt = 1.0 - p_sel
    else:
        # torch BCELoss clamps the log terms at -100
        log_p = jnp.maximum(jnp.log(p), -100.0)
        log_q = jnp.maximum(jnp.log(q), -100.0)
        nlogpt = t * log_p + (1.0 - t) * log_q               # == -BCE  (<= 0)
        # _pt = t*(1-p) + (1-t)*p  ==  p + t - 2*p*t   (fewer VALU ops)
        pt = p + t - 2.0 * (p * t)

    # pt ** gamma : integer gamma stays off the EUP
    if float(gamma).is_integer() and 0 <= int(gamma) <= 16:
        pt_pow = _int_pow(pt, int(gamma))
    else:
        # non-integer gamma: guard pt==0 so exp(gamma*log(0)) can't NaN
        pt_safe = jnp.maximum(pt, jnp.float32(1e-30))
        pt_pow = jnp.where(pt > 0.0,
                           jnp.power(pt_safe, jnp.float32(gamma)),
                           jnp.float32(0.0))

    # Negative of the per-element focal loss; the wrapper negates the final
    # scalar so we save one VALU negate per element here.
    contrib = pt_pow * alpha_w * nlogpt

    if needs_mask:
        # Mask rows past the logical end of the stream (ragged last block and
        # duplicated clamped blocks).  jnp.where is a true select, so garbage
        # (even NaN) from DMA-clipped reads cannot leak into the accumulator.
        start = (c * inner + j) * blk_rows
        row = start + jax.lax.broadcasted_iota(jnp.int32, contrib.shape, 0)
        contrib = jnp.where(row < valid_rows, contrib, jnp.float32(0.0))

    # pure VPU elementwise accumulation into block-shaped scratch
    acc_ref[...] += contrib

    # one cross-lane reduction per chunk; partial sum written into lane (0, 0)
    @pl.when(j == inner - 1)
    def _():
        partial = jnp.sum(acc_ref[...])
        r = jax.lax.broadcasted_iota(jnp.int32, out_ref.shape, 0)
        col = jax.lax.broadcasted_iota(jnp.int32, out_ref.shape, 1)
        out_ref[...] = jnp.where((r == 0) & (col == 0), partial, jnp.float32(0.0))


def focal_loss(y_pred, y_true, gamma=2, alpha=0.25, *, binary_targets=False):
    # channel-mismatch handling (glue), same as the torch module
    if y_pred.shape[1] != y_true.shape[1]:
        y_true = jnp.concatenate([y_true, 1.0 - y_true], axis=1)
    assert y_true.shape == y_pred.shape, "predict & target shape don't match"

    total = y_pred.size
    # stream native dtype (bf16 welcome); the kernel casts to f32 internally
    pred_flat = y_pred.reshape(-1)   # metadata-only reshape
    true_flat = y_true.reshape(-1)

    # ---- lane width: pick a divisor of the element count (no pad copy). ----
    # Prefer one that also makes the row count a multiple of 8 so no in-kernel
    # masking is needed at all for the common case.
    lane_opts = [l for l in (512, 256, 128) if total % l == 0]
    LANES = None
    for l in lane_opts:
        if (total // l) % 8 == 0:
            LANES = l
            break
    if LANES is None and lane_opts:
        LANES = lane_opts[0]

    if LANES is None:
        # TODO(synk): element count not a multiple of 128; minimal pad to one
        # lane row (zero padding contributes exactly 0 to the sum), which still
        # emits one stream copy — unavoidable without a 1-D ragged layout.
        LANES = 128
        padded = _round_up(total, LANES)
        pred_flat = jnp.pad(pred_flat, (0, padded - total))
        true_flat = jnp.pad(true_flat, (0, padded - total))
        rows = padded // LANES
    else:
        rows = total // LANES

    pred2 = pred_flat.reshape(rows, LANES)   # metadata-only reshape
    true2 = true_flat.reshape(rows, LANES)

    # ---- tiling: lane-dense blocks, ~4 MiB f32 each (amortizes ~0.35us/step) ----
    MAX_BLK_ROWS = 2048   # (2048, 512) f32 = 4 MiB; 2 in x 2 buf + acc ~= 20 MiB
    blk_rows = min(MAX_BLK_ROWS, _round_up(rows, 8))
    n_blocks = -(-rows // blk_rows)

    # leading 'parallel' chunk axis, balanced at block granularity: shards the
    # stream across v7x's two TensorCores; sequential (harmless) on v5e/v6e.
    num_chunks = 2 if n_blocks >= 2 else 1
    inner = -(-n_blocks // num_chunks)
    needs_clamp = num_chunks * inner > n_blocks          # grid has spare block(s)
    needs_mask = num_chunks * inner * blk_rows != rows   # any logical overhang

    if needs_clamp:
        last_blk = n_blocks - 1
        idx_map = lambda c, j: (jnp.minimum(c * inner + j, last_blk), 0)
    else:
        idx_map = lambda c, j: (c * inner + j, 0)

    kernel = functools.partial(
        _focal_loss_kernel, gamma=gamma, alpha=float(alpha), inner=inner,
        blk_rows=blk_rows, valid_rows=rows, needs_mask=needs_mask,
        binary_targets=binary_targets)

    n_logs = 1 if binary_targets else 2
    cost = pl.CostEstimate(
        flops=18 * int(total),
        transcendentals=n_logs * int(total),
        bytes_accessed=int(total) * (pred2.dtype.itemsize + true2.dtype.itemsize)
                       + num_chunks * 8 * 128 * 4,
    )

    out = pl.pallas_call(
        kernel,
        out_shape=jax.ShapeDtypeStruct((num_chunks * 8, 128), jnp.float32),
        grid_spec=pltpu.PrefetchScalarGridSpec(
            num_scalar_prefetch=0,
            grid=(num_chunks, inner),
            in_specs=[
                pl.BlockSpec((blk_rows, LANES), idx_map),
                pl.BlockSpec((blk_rows, LANES), idx_map),
            ],
            out_specs=pl.BlockSpec((8, 128), lambda c, j: (c, 0)),
            scratch_shapes=[pltpu.VMEM((blk_rows, LANES), jnp.float32)],
        ),
        compiler_params=pltpu.CompilerParams(
            dimension_semantics=("parallel", "arbitrary"),
            vmem_limit_bytes=28 * 1024 * 1024,   # fits v5e/v6e/v7x (v7x: 64 MiB phys)
        ),
        cost_estimate=cost,
    )(pred2, true2)

    # per-chunk partial sums sit at out[8*c, 0]; everything else is zero.
    # contrib accumulated was the NEGATIVE loss term -> negate once here.
    return -jnp.sum(out) / jnp.float32(total)


def _focal_loss_ref(y_pred, y_true, gamma=2, alpha=0.25):
    # pure-JAX reference mirroring the torch forward
    if y_pred.shape[1] != y_true.shape[1]:
        y_true = jnp.concatenate([y_true, 1.0 - y_true], axis=1)
    n = y_pred.shape[0]
    p = y_pred.reshape(n, -1).astype(jnp.float32)
    t = y_true.reshape(n, -1).astype(jnp.float32)
    alpha_w = jnp.where(t != 0.0, alpha, 1.0 - alpha)
    logpt = -(t * jnp.maximum(jnp.log(p), -100.0)
              + (1.0 - t) * jnp.maximum(jnp.log(1.0 - p), -100.0))
    pt = t * (1.0 - p) + (1.0 - t) * p
    return jnp.mean(jnp.mean(jnp.power(pt, gamma) * alpha_w * logpt, axis=1))


if __name__ == "__main__":
    key = jax.random.PRNGKey(0)
    k1, k2, k3, k4 = jax.random.split(key, 4)

    # small shape consistent with the module: (N, C, H, W)
    shape = (2, 4, 16, 16)
    y_pred = jax.nn.sigmoid(jax.random.normal(k1, shape, dtype=jnp.float32))
    y_true = (jax.random.uniform(k2, shape) > 0.5).astype(jnp.float32)

    loss = focal_loss(y_pred, y_true, gamma=2, alpha=0.25)
    loss = jax.block_until_ready(loss)
    ref = _focal_loss_ref(y_pred, y_true, gamma=2, alpha=0.25)
    assert jnp.allclose(loss, ref, rtol=1e-5, atol=1e-6), (loss, ref)

    # opt-in binary-label fast path (single log); exact for hard {0,1} targets
    loss_bin = focal_loss(y_pred, y_true, gamma=2, alpha=0.25, binary_targets=True)
    loss_bin = jax.block_until_ready(loss_bin)
    assert jnp.allclose(loss_bin, ref, rtol=1e-5, atol=1e-6), (loss_bin, ref)

    # moderate shape that exercises the 2-chunk split + ragged-block masking
    shape2 = (2056, 128)
    y_pred2 = jax.nn.sigmoid(jax.random.normal(k3, shape2, dtype=jnp.float32))
    y_true2 = (jax.random.uniform(k4, shape2) > 0.5).astype(jnp.float32)
    loss2 = focal_loss(y_pred2, y_true2, gamma=2, alpha=0.25)
    loss2 = jax.block_until_ready(loss2)
    ref2 = _focal_loss_ref(y_pred2, y_true2, gamma=2, alpha=0.25)
    assert jnp.allclose(loss2, ref2, rtol=1e-4, atol=1e-6), (loss2, ref2)

    print("KERNEL_OK")
</pallas_src>

<mosaic_0001>
module attributes {stable_mosaic.version = 11 : i64} {
  func.func @_focal_loss_kernel(%arg0: i32, %arg1: i32, %arg2: memref<8x256xf32, #tpu.memory_space<vmem>>, %arg3: memref<8x256xf32, #tpu.memory_space<vmem>>, %arg4: memref<8x128xf32, #tpu.memory_space<vmem>>, %arg5: memref<8x256xf32, #tpu.memory_space<vmem>>) attributes {dimension_semantics = [#tpu.dimension_semantics<parallel>, #tpu.dimension_semantics<arbitrary>], iteration_bounds = array<i64: 1, 1>, scalar_prefetch = 0 : i64, scratch_operands = 1 : i64, tpu.core_type = #tpu.core_type<tc>, window_params = [{transform_indices = @transform_0, window_bounds = array<i64: 8, 256>}, {transform_indices = @transform_1, window_bounds = array<i64: 8, 256>}, {transform_indices = @transform_2, window_bounds = array<i64: 8, 128>}]} {
    %c0_i32 = arith.constant 0 : i32
    %0 = arith.cmpi eq, %arg1, %c0_i32 : i32
    %1 = arith.extui %0 : i1 to i32
    %c0_i32_0 = arith.constant 0 : i32
    %2 = arith.cmpi ne, %1, %c0_i32_0 : i32
    scf.if %2 {
      %cst_17 = arith.constant 0.000000e+00 : f32
      %37 = vector.broadcast %cst_17 : f32 to vector<8x256xf32>
      %c0_18 = arith.constant 0 : index
      %c0_19 = arith.constant 0 : index
      %38 = vector.load %arg5[%c0_18, %c0_19] : memref<8x256xf32, #tpu.memory_space<vmem>>, vector<8x256xf32>
      tpu.vector_store %arg5[%c0_18, %c0_19], %37 {strides = array<i32>} : memref<8x256xf32, #tpu.memory_space<vmem>>, vector<8x256xf32>,
    } else {
    }
    %c0 = arith.constant 0 : index
    %c0_1 = arith.constant 0 : index
    %3 = vector.load %arg2[%c0, %c0_1] : memref<8x256xf32, #tpu.memory_space<vmem>>, vector<8x256xf32>
    %c0_2 = arith.constant 0 : index
    %c0_3 = arith.constant 0 : index
    %4 = vector.load %arg3[%c0_2, %c0_3] : memref<8x256xf32, #tpu.memory_space<vmem>>, vector<8x256xf32>
    %cst = arith.constant 0.000000e+00 : f32
    %5 = vector.broadcast %cst : f32 to vector<8x256xf32>
    %6 = arith.cmpf one, %4, %5 : vector<8x256xf32>
    %cst_4 = arith.constant 2.500000e-01 : f32
    %cst_5 = arith.constant 7.500000e-01 : f32
    %7 = vector.broadcast %cst_4 : f32 to vector<8x256xf32>
    %8 = vector.broadcast %cst_5 : f32 to vector<8x256xf32>
    %9 = arith.select %6, %7, %8 : vector<8x256xi1>, vector<8x256xf32>
    %cst_6 = arith.constant 1.000000e+00 : f32
    %10 = vector.broadcast %cst_6 : f32 to vector<8x256xf32>
    %11 = arith.subf %10, %3 : vector<8x256xf32>
    %12 = math.log %3 : vector<8x256xf32>
    %cst_7 = arith.constant -1.000000e+02 : f32
    %13 = vector.broadcast %cst_7 : f32 to vector<8x256xf32>
    %14 = arith.maximumf %12, %13 : vector<8x256xf32>
    %15 = math.log %11 : vector<8x256xf32>
    %cst_8 = arith.constant -1.000000e+02 : f32
    %16 = vector.broadcast %cst_8 : f32 to vector<8x256xf32>
    %17 = arith.maximumf %15, %16 : vector<8x256xf32>
    %18 = arith.mulf %4, %14 : vector<8x256xf32>
    %cst_9 = arith.constant 1.000000e+00 : f32
    %19 = vector.broadcast %cst_9 : f32 to vector<8x256xf32>
    %20 = arith.subf %19, %4 : vector<8x256xf32>
    %21 = arith.mulf %20, %17 : vector<8x256xf32>
    %22 = arith.addf %18, %21 : vector<8x256xf32>
    %23 = arith.addf %3, %4 : vector<8x256xf32>
    %24 = arith.mulf %3, %4 : vector<8x256xf32>
    %cst_10 = arith.constant 2.000000e+00 : f32
    %25 = vector.broadcast %cst_10 : f32 to vector<8x256xf32>
    %26 = arith.mulf %25, %24 : vector<8x256xf32>
    %27 = arith.subf %23, %26 : vector<8x256xf32>
    %28 = arith.mulf %27, %27 : vector<8x256xf32>
    %29 = arith.mulf %28, %9 : vector<8x256xf32>
    %30 = arith.mulf %29, %22 : vector<8x256xf32>
    %c0_11 = arith.constant 0 : index
    %c0_12 = arith.constant 0 : index
    %31 = vector.load %arg5[%c0_11, %c0_12] : memref<8x256xf32, #tpu.memory_space<vmem>>, vector<8x256xf32>
    %32 = arith.addf %31, %30 : vector<8x256xf32>
    %c0_13 = arith.constant 0 : index
    %c0_14 = arith.constant 0 : index
    %33 = vector.load %arg5[%c0_13, %c0_14] : memref<8x256xf32, #tpu.memory_space<vmem>>, vector<8x256xf32>
    tpu.vector_store %arg5[%c0_13, %c0_14], %32 {strides = array<i32>} : memref<8x256xf32, #tpu.memory_space<vmem>>, vector<8x256xf32>,
    %c0_i32_15 = arith.constant 0 : i32
    %34 = arith.cmpi eq, %arg1, %c0_i32_15 : i32
    %35 = arith.extui %34 : i1 to i32
    %c0_i32_16 = arith.constant 0 : i32
    %36 = arith.cmpi ne, %35, %c0_i32_16 : i32
    scf.if %36 {
      %c0_17 = arith.constant 0 : index
      %c0_18 = arith.constant 0 : index
      %37 = vector.load %arg5[%c0_17, %c0_18] : memref<8x256xf32, #tpu.memory_space<vmem>>, vector<8x256xf32>
      %38 = vector.shape_cast %37 : vector<8x256xf32> to vector<1x8x256xf32>
      %cst_19 = arith.constant dense<0.000000e+00> : vector<1xf32>
      %39 = vector.multi_reduction <add>, %38, %cst_19 [1, 2] : vector<1x8x256xf32> to vector<1xf32>
      %40 = vector.shape_cast %39 : vector<1xf32> to vector<1x1x1xf32>
      %41 = vector.extract %40[0, 0, 0] : f32 from vector<1x1x1xf32>
      %42 = tpu.iota {dimensions = array<i32: 0>} : vector<8x128xi32>
      %43 = tpu.iota {dimensions = array<i32: 1>} : vector<8x128xi32>
      %c0_i32_20 = arith.constant 0 : i32
      %44 = vector.broadcast %c0_i32_20 : i32 to vector<8x128xi32>
      %45 = arith.cmpi eq, %42, %44 : vector<8x128xi32>
      %c0_i32_21 = arith.constant 0 : i32
      %46 = vector.broadcast %c0_i32_21 : i32 to vector<8x128xi32>
      %47 = arith.cmpi eq, %43, %46 : vector<8x128xi32>
      %48 = arith.andi %45, %47 : vector<8x128xi1>
      %cst_22 = arith.constant 0.000000e+00 : f32
      %49 = vector.broadcast %41 : f32 to vector<8x128xf32>
      %50 = vector.broadcast %cst_22 : f32 to vector<8x128xf32>
      %51 = arith.select %48, %49, %50 : vector<8x128xi1>, vector<8x128xf32>
      %c0_23 = arith.constant 0 : index
      %c0_24 = arith.constant 0 : index
      %52 = vector.load %arg4[%c0_23, %c0_24] : memref<8x128xf32, #tpu.memory_space<vmem>>, vector<8x128xf32>
      tpu.vector_store %arg4[%c0_23, %c0_24], %51 {strides = array<i32>} : memref<8x128xf32, #tpu.memory_space<vmem>>, vector<8x128xf32>,
    } else {
    }
    return
  }
  func.func @transform_0(%arg0: i32, %arg1: i32) -> (i32, i32) {
    %c1_i32 = arith.constant 1 : i32
    %0 = arith.muli %arg0, %c1_i32 : i32
    %1 = arith.addi %0, %arg1 : i32
    %c0_i32 = arith.constant 0 : i32
    %c0_i32_0 = arith.constant 0 : i32
    return %1, %c0_i32 : i32, i32
  }
  func.func @transform_1(%arg0: i32, %arg1: i32) -> (i32, i32) {
    %c1_i32 = arith.constant 1 : i32
    %0 = arith.muli %arg0, %c1_i32 : i32
    %1 = arith.addi %0, %arg1 : i32
    %c0_i32 = arith.constant 0 : i32
    %c0_i32_0 = arith.constant 0 : i32
    return %1, %c0_i32 : i32, i32
  }
  func.func @transform_2(%arg0: i32, %arg1: i32) -> (i32, i32) {
    %c0_i32 = arith.constant 0 : i32
    %c0_i32_0 = arith.constant 0 : i32
    return %arg0, %c0_i32 : i32, i32
  }
}

</mosaic_0001>

<llo_original>
// kernel: tpu_custom_call.1
$region0: #{tpu_custom_call.1}
  #allocation0 [shape = 'u32[]', space=smem, size = 0x4, offset = 0x4, fixed_abs, tag = 'smem constant byte address 0x4 - core index']
  #allocation1 [shape = 'u32[144,128]{1,0:T(1,128)}', space=vmem, size = 0x12000, scoped, tag = 'internal scratch']
  #allocation2 [shape = 'f32[8,256]{1,0:T(8,128)}', space=vmem, size = 0x2000, scoped, tag = 'scratch operand']
  %s0 = inlined_call_operand.hbm [shape: f32[8,256], index: 0, kind: input, shape index: {}]
  %s1 = inlined_call_operand.hbm [shape: f32[8,256], index: 1, kind: input, shape index: {}]
  %s2 = inlined_call_operand.hbm [shape: f32[8,128], index: 2, kind: output, shape index: {}]
  %s3 = sld [smem:[#allocation0]]
  $region34: #{tpu_custom_call.1} parent=0
    _
  %s5 = ssub.s32 1, %s3
  %s6 = scalar_select 0, %s5, %s3
  $region1: #{tpu_custom_call.1} parent=0
    #allocation3 [shape = 'u8[8192]{0}', space=vmem, size = 0x2000, scoped, tag = 'input window, operand 0, single buffered']
    #allocation4 [shape = 's32[1]{0}', space=sflag, size = 0x4, scoped, tag = 'scoped memory for tpu_custom_call.1']
    #allocation5 [shape = 's32[1]{0}', space=sflag, size = 0x4, scoped, tag = 'scoped memory for tpu_custom_call.1']
    #allocation6 [shape = 'u8[8192]{0}', space=vmem, size = 0x2000, scoped, tag = 'input window, operand 1, single buffered']
    #allocation7 [shape = 's32[1]{0}', space=sflag, size = 0x4, scoped, tag = 'scoped memory for tpu_custom_call.1']
    #allocation8 [shape = 'u8[4096]{0}', space=vmem, size = 0x1000, scoped, tag = 'output window, operand 0, single buffered']
    %7 = vsyncpa [#allocation4], 0
    %8 = vsyncpa [#allocation7], 0
    %9 = vsyncpa [#allocation5], 0
    // Predicated region
    $region2: #{tpu_custom_call.1} parent=1 // pred_check
      _
    $region3: #{tpu_custom_call.1} parent=1 // pred_check_branch
      %11 = sbr.rel (0) target = $region5
    $region4: #{tpu_custom_call.1} parent=1 // pred_region
      %s12 = sadd.s32 0, 0
      %s14 = ssub.s32 256, 256
      %15 = vsyncadd [#allocation4], %s14
      %s16 = smul.addr %s12, 2
      %s17 = smul.addr %s16, 128
      %s18 = scalar_lea.hbm %s0, %s17
      %s20 = sshll.u32 [#allocation3], 4
      %s21 = int_to_ptr.vmem [resolvable:$true] %s20
      %23 = dma.hbm_to_vmem [thread:$0]  %s18, 256, %s21, [#allocation4]
    $region5: #{tpu_custom_call.1} parent=1 // pred_fallthru
      _
    // Predicated region
    $region6: #{tpu_custom_call.1} parent=1 // pred_check
      _
    $region7: #{tpu_custom_call.1} parent=1 // pred_check_branch
      %25 = sbr.rel (0) target = $region9
    $region8: #{tpu_custom_call.1} parent=1 // pred_region
      %s26 = sadd.s32 0, 0
      %s28 = ssub.s32 256, 256
      %29 = vsyncadd [#allocation7], %s28
      %s30 = smul.addr %s26, 2
      %s31 = smul.addr %s30, 128
      %s32 = scalar_lea.hbm %s1, %s31
      %s34 = sshll.u32 [#allocation6], 4
      %s35 = int_to_ptr.vmem [resolvable:$true] %s34
      %37 = dma.hbm_to_vmem [thread:$0]  %s32, 256, %s35, [#allocation7]
    $region9: #{tpu_custom_call.1} parent=1 // pred_fallthru
      _
    // Predicated region
    $region10: #{tpu_custom_call.1} parent=1 // pred_check
      _
    $region11: #{tpu_custom_call.1} parent=1 // pred_check_branch
      %39 = sbr.rel (0) target = $region13
    $region12: #{tpu_custom_call.1} parent=1 // pred_region
      %40 = dma.done [#allocation4], 256
    $region13: #{tpu_custom_call.1} parent=1 // pred_fallthru
      _
    // Predicated region
    $region14: #{tpu_custom_call.1} parent=1 // pred_check
      _
    $region15: #{tpu_custom_call.1} parent=1 // pred_check_branch
      %42 = sbr.rel (0) target = $region17
    $region16: #{tpu_custom_call.1} parent=1 // pred_region
      %43 = dma.done [#allocation7], 256
    $region17: #{tpu_custom_call.1} parent=1 // pred_fallthru
      _
    %s44 = sadd.s32 0, 0
    %s45 = sadd.s32 0, 0
    %p46 = scmp.eq.s32.totalorder 0, 0
    // Predicated region
    $region18: #{tpu_custom_call.1} parent=1 // pred_check
      %p47 = pneg %p46
    $region19: #{tpu_custom_call.1} parent=1 // pred_check_branch
      %49 = sbr.rel (%p47) target = $region21
    $region20: #{tpu_custom_call.1} parent=1 // pred_region
      %50 = vst [vmem:[#allocation2] sm:$0xff] 0.0
      %51 = vst [vmem:[#allocation2 + $0x8] sm:$0xff] 0.0
    $region21: #{tpu_custom_call.1} parent=1 // pred_fallthru
      _
    %v52 = vld [vmem:[#allocation3] sm:$0xff]
    %v53 = vld [vmem:[#allocation3 + $0x8] sm:$0xff]
    %v54 = vld [vmem:[#allocation6] sm:$0xff]
    %v55 = vld [vmem:[#allocation6 + $0x8] sm:$0xff]
    %vm56 = vcmp.ne.f32.partialorder %v54, 0.0
    %vm57 = vcmp.ne.f32.partialorder %v55, 0.0
    %v58 = vsel %vm56, 0.25, 0.75
    %v59 = vsel %vm57, 0.25, 0.75
    %v60 = vsub.f32 1.0, %v52
    %v61 = vsub.f32 1.0, %v53
    %v62 = vlog2.pop %v52
    %v63 = vmul.f32 %v62, 0.6931472
    %v64 = vlog2.pop %v53
    %v65 = vmul.f32 %v64, 0.6931472
    %v66 = vmax.f32 %v63, -100.0
    %v67 = vmax.f32 %v65, -100.0
    %v68 = vlog2.pop %v60
    %v69 = vmul.f32 %v68, 0.6931472
    %v70 = vlog2.pop %v61
    %v71 = vmul.f32 %v70, 0.6931472
    %v72 = vmax.f32 %v69, -100.0
    %v73 = vmax.f32 %v71, -100.0
    %v74 = vmul.f32 %v54, %v66
    %v75 = vmul.f32 %v55, %v67
    %v76 = vsub.f32 1.0, %v54
    %v77 = vsub.f32 1.0, %v55
    %v78 = vmul.f32 %v76, %v72
    %v79 = vmul.f32 %v77, %v73
    %v80 = vadd.f32 %v74, %v78
    %v81 = vadd.f32 %v75, %v79
    %v82 = vadd.f32 %v52, %v54
    %v83 = vadd.f32 %v53, %v55
    %v84 = vmul.f32 %v52, %v54
    %v85 = vmul.f32 %v53, %v55
    %v86 = vmul.f32 %v84, 2.0
    %v87 = vmul.f32 %v85, 2.0
    %v88 = vsub.f32 %v82, %v86
    %v89 = vsub.f32 %v83, %v87
    %v90 = vmul.f32 %v88, %v88
    %v91 = vmul.f32 %v89, %v89
    %v92 = vmul.f32 %v90, %v58
    %v93 = vmul.f32 %v91, %v59
    %v94 = vmul.f32 %v92, %v80
    %v95 = vmul.f32 %v93, %v81
    %v96 = vld [vmem:[#allocation2] sm:$0xff]
    %v97 = vld [vmem:[#allocation2 + $0x8] sm:$0xff]
    %v98 = vadd.f32 %v96, %v94
    %v99 = vadd.f32 %v97, %v95
    %100 = vst [vmem:[#allocation2] sm:$0xff] %v98
    %101 = vst [vmem:[#allocation2 + $0x8] sm:$0xff] %v99
    // Predicated region
    $region22: #{tpu_custom_call.1} parent=1 // pred_check
      %p102 = pneg %p46
    $region23: #{tpu_custom_call.1} parent=1 // pred_check_branch
      %104 = sbr.rel (%p102) target = $region25
    $region24: #{tpu_custom_call.1} parent=1 // pred_region
      %v105 = vld [vmem:[#allocation2] sm:$0xff]
      %v106 = vld [vmem:[#allocation2 + $0x8] sm:$0xff]
      %v107 = vadd.f32 %v105, %v106
      %108 = vadd.xlane.f32.xlu0 %v107
      %v109 = vpop.xlane.xlu0 %108
      %v110 = vrot.slane %v109, 4
      %v111 = vadd.f32 %v109, %v110
      %v112 = vrot.slane %v111, 2
      %v113 = vadd.f32 %v111, %v112
      %v114 = vrot.slane %v113, 1
      %v115 = vadd.f32 %v113, %v114
      %s116 = vtos %v115
      %v117 = vlaneseq
      %v118 = vshrl.u32 %v117, 7
      %v119 = vlaneseq
      %v120 = vand.u32 %v119, 127
      %vm121 = vcmp.eq.s32.totalorder %v118, 0
      %vm122 = vcmp.eq.s32.totalorder %v120, 0
      %vm123 = vmand %vm121, %vm122
      %v124 = vstv %s116
      %v125 = vsel %vm123, %v124, 0.0
      %126 = vst [vmem:[#allocation8] sm:$0xff] %v125
    $region25: #{tpu_custom_call.1} parent=1 // pred_fallthru
      _
    // Predicated region
    $region26: #{tpu_custom_call.1} parent=1 // pred_check
      _
    $region27: #{tpu_custom_call.1} parent=1 // pred_check_branch
      %128 = sbr.rel (0) target = $region29
    $region28: #{tpu_custom_call.1} parent=1 // pred_region
      %s130 = ssub.s32 128, 128
      %131 = vsyncadd [#allocation5], %s130
      %s133 = sshll.u32 [#allocation8], 4
      %s134 = int_to_ptr.vmem [resolvable:$true] %s133
      %136 = dma.vmem_to_hbm [thread:$0]  %s134, 128, %s2, [#allocation5]
    $region29: #{tpu_custom_call.1} parent=1 // pred_fallthru
      _
    // Predicated region
    $region30: #{tpu_custom_call.1} parent=1 // pred_check
      _
    $region31: #{tpu_custom_call.1} parent=1 // pred_check_branch
      %138 = sbr.rel (0) target = $region33
    $region32: #{tpu_custom_call.1} parent=1 // pred_region
      %139 = dma.done [#allocation5], 128
    $region33: #{tpu_custom_call.1} parent=1 // pred_fallthru
      _
    %140 = vsyncpa [#allocation4], 1
    %141 = vsyncpa [#allocation7], 1
    %142 = vsyncpa [#allocation5], 1

</llo_original>
